<compile_context>
chip_gen: v6e
topology: v6e:2x2x1
jax: 0.10.0
libtpu: 0.0.40
codegen_flags: <defaults>
</compile_context>

<pallas_src>
import math
from functools import partial

import jax
import jax.numpy as jnp
from jax.experimental import pallas as pl
from jax.experimental.pallas import tpu as pltpu


def _pe_add_kernel(x_ref, pe_ref, o_ref):
    # x_ref / o_ref: (B, tl); pe_ref: (1, tl), already in x.dtype.
    o_ref[...] = x_ref[...] + pe_ref[...]


def make_pe_table(max_len: int, d_model: int, dtype=jnp.float32):
    """Sinusoidal positional-encoding table, shape (max_len, d_model)."""
    assert d_model % 2 == 0, "d_model must be even (same limitation as the torch code)"
    position = jnp.arange(0.0, max_len, dtype=jnp.float32)[:, None]           # (L, 1)
    div_term = jnp.exp(
        jnp.arange(0.0, d_model, 2, dtype=jnp.float32)
        * -(math.log(10000.0) / d_model)
    )                                                                          # (D/2,)
    angles = position * div_term                                               # (L, D/2)
    pe = jnp.zeros((max_len, d_model), jnp.float32)
    pe = pe.at[:, 0::2].set(jnp.sin(angles))
    pe = pe.at[:, 1::2].set(jnp.cos(angles))
    return pe.astype(dtype)


@partial(jax.jit, static_argnames=("block_bytes",))
def positional_encoding_forward(x: jax.Array, pe: jax.Array, *,
                                block_bytes: int = 2 * 1024 * 1024) -> jax.Array:
    """x: (B, S, D); pe: (max_len, D). Returns x + pe[:S] (dropout = eval identity)."""
    B, S, D = x.shape
    max_len = pe.shape[0]
    if S > max_len:
        raise ValueError(f"sequence length {S} exceeds positional table max_len {max_len}")

    L = S * D
    # Cast once in the wrapper (not per-element in the kernel) and flatten to a
    # lane-dense 2-D slab; both reshapes are metadata-only in XLA.
    pe2d = pe[:S, :].astype(x.dtype).reshape(1, L)
    x2d = x.reshape(B, L)

    itemsize = jnp.dtype(x.dtype).itemsize
    if B * L * itemsize <= block_bytes:
        tl = L  # tiny workload: one grid step, single full-width block
    else:
        # Largest multiple of 128 keeping the x block <= block_bytes
        # (~2 MiB default => ~10 MiB of double-buffered VMEM total).
        # (If B alone is enormous this can overshoot; batch tiling is skipped
        #  for simplicity since realistic shapes never hit it.)
        tl = 128 * max(1, block_bytes // (B * itemsize * 128))
    num_lane_tiles = pl.cdiv(L, tl)  # ragged last tile handled by Pallas padding

    out2d = pl.pallas_call(
        _pe_add_kernel,
        out_shape=jax.ShapeDtypeStruct((B, L), x.dtype),
        grid_spec=pltpu.PrefetchScalarGridSpec(
            num_scalar_prefetch=0,
            grid=(num_lane_tiles,),
            in_specs=[
                pl.BlockSpec((B, tl), lambda l: (0, l)),   # x lane-tile
                pl.BlockSpec((1, tl), lambda l: (0, l)),   # matching PE lane-tile
            ],
            out_specs=pl.BlockSpec((B, tl), lambda l: (0, l)),
        ),
        input_output_aliases={0: 0},  # output reuses the x2d buffer
        compiler_params=pltpu.CompilerParams(
            dimension_semantics=("parallel",),   # shard lane tiles across v7x's 2 TCs
            vmem_limit_bytes=32 * 1024 * 1024,
        ),
    )(x2d, pe2d)
    return out2d.reshape(B, S, D)


if __name__ == "__main__":
    key = jax.random.PRNGKey(0)
    k1, k2 = jax.random.split(key)

    # Small deterministic example: batch=2, seq=8, d_model=32, max_len=64.
    B, S, D, MAX_LEN = 2, 8, 32, 64
    x = jax.random.normal(k1, (B, S, D), dtype=jnp.float32)
    pe = make_pe_table(MAX_LEN, D, dtype=jnp.float32)

    out = jax.block_until_ready(positional_encoding_forward(x, pe))
    ref = x + pe[None, :S, :]
    assert out.shape == (B, S, D)
    assert jnp.allclose(out, ref, atol=1e-6, rtol=1e-6), "f32 mismatch vs reference"

    # Exercise the multi-tile (lane-tiled) path with a tiny block budget.
    B2, S2, D2 = 2, 64, 128
    x2 = jax.random.normal(k2, (B2, S2, D2), dtype=jnp.float32)
    pe2 = make_pe_table(128, D2, dtype=jnp.float32)
    out2 = jax.block_until_ready(
        positional_encoding_forward(x2, pe2, block_bytes=16 * 1024))
    ref2 = x2 + pe2[None, :S2, :]
    assert jnp.allclose(out2, ref2, atol=1e-6, rtol=1e-6), "multi-tile mismatch"

    # bf16 activations: PE cast to bf16 once in the wrapper (buffer-in-model-dtype).
    xb = x.astype(jnp.bfloat16)
    outb = jax.block_until_ready(positional_encoding_forward(xb, pe))
    refb = xb + pe[:S, :].astype(jnp.bfloat16)[None]
    assert jnp.allclose(outb.astype(jnp.float32), refb.astype(jnp.float32),
                        atol=1e-2, rtol=1e-2), "bf16 mismatch"

    print("KERNEL_OK")
</pallas_src>

<mosaic_0001>
module attributes {stable_mosaic.version = 11 : i64} {
  func.func @_pe_add_kernel(%arg0: i32, %arg1: memref<2x256xf32, #tpu.memory_space<vmem>>, %arg2: memref<1x256xf32, #tpu.memory_space<vmem>>, %arg3: memref<2x256xf32, #tpu.memory_space<vmem>>) attributes {dimension_semantics = [#tpu.dimension_semantics<parallel>], iteration_bounds = array<i64: 1>, scalar_prefetch = 0 : i64, scratch_operands = 0 : i64, tpu.core_type = #tpu.core_type<tc>, window_params = [{transform_indices = @transform_0, window_bounds = array<i64: 2, 256>}, {transform_indices = @transform_1, window_bounds = array<i64: 1, 256>}, {transform_indices = @transform_2, window_bounds = array<i64: 2, 256>}]} {
    %c0 = arith.constant 0 : index
    %c0_0 = arith.constant 0 : index
    %0 = vector.load %arg1[%c0, %c0_0] : memref<2x256xf32, #tpu.memory_space<vmem>>, vector<2x256xf32>
    %c0_1 = arith.constant 0 : index
    %c0_2 = arith.constant 0 : index
    %1 = vector.load %arg2[%c0_1, %c0_2] : memref<1x256xf32, #tpu.memory_space<vmem>>, vector<1x256xf32>
    %2 = vector.broadcast %1 : vector<1x256xf32> to vector<2x256xf32>
    %3 = arith.addf %0, %2 : vector<2x256xf32>
    %c0_3 = arith.constant 0 : index
    %c0_4 = arith.constant 0 : index
    %4 = vector.load %arg3[%c0_3, %c0_4] : memref<2x256xf32, #tpu.memory_space<vmem>>, vector<2x256xf32>
    tpu.vector_store %arg3[%c0_3, %c0_4], %3 {strides = array<i32>} : memref<2x256xf32, #tpu.memory_space<vmem>>, vector<2x256xf32>,
    return
  }
  func.func @transform_0(%arg0: i32) -> (i32, i32) {
    %c0_i32 = arith.constant 0 : i32
    %c0_i32_0 = arith.constant 0 : i32
    return %c0_i32, %arg0 : i32, i32
  }
  func.func @transform_1(%arg0: i32) -> (i32, i32) {
    %c0_i32 = arith.constant 0 : i32
    %c0_i32_0 = arith.constant 0 : i32
    return %c0_i32, %arg0 : i32, i32
  }
  func.func @transform_2(%arg0: i32) -> (i32, i32) {
    %c0_i32 = arith.constant 0 : i32
    %c0_i32_0 = arith.constant 0 : i32
    return %c0_i32, %arg0 : i32, i32
  }
}

</mosaic_0001>

<llo_original>
// kernel: positional_encoding_forward.1
$region0: #{positional_encoding_forward.1}
  #allocation0 [shape = 'u32[]', space=smem, size = 0x4, offset = 0x4, fixed_abs, tag = 'smem constant byte address 0x4 - core index']
  #allocation1 [shape = 'u32[144,128]{1,0:T(1,128)}', space=vmem, size = 0x12000, scoped, tag = 'internal scratch']
  %s0 = inlined_call_operand.vmem [shape: f32[2,256], index: 0, kind: input, shape index: {}, may-alias: {0,2}]
  %s1 = inlined_call_operand.vmem [shape: f32[1,256], index: 1, kind: input, shape index: {}]
  %s2 = inlined_call_operand.vmem [shape: f32[2,256], index: 2, kind: output, shape index: {}, may-alias: {0,2}]
  %s3 = sld [smem:[#allocation0]]
  $region18: #{positional_encoding_forward.1} parent=0
    _
  %s5 = ssub.s32 1, %s3
  %s6 = scalar_select 0, %s5, %s3
  // Predicated region
  $region2: #{positional_encoding_forward.1} parent=0 // pred_check
    _
  $region3: #{positional_encoding_forward.1} parent=0 // pred_check_branch
    %8 = sbr.rel (0) target = $region5
  $region4: #{positional_encoding_forward.1} parent=0 // pred_region
    _
  $region5: #{positional_encoding_forward.1} parent=0 // pred_fallthru
    _
  // Predicated region
  $region6: #{positional_encoding_forward.1} parent=0 // pred_check
    _
  $region7: #{positional_encoding_forward.1} parent=0 // pred_check_branch
    %10 = sbr.rel (0) target = $region9
  $region8: #{positional_encoding_forward.1} parent=0 // pred_region
    _
  $region9: #{positional_encoding_forward.1} parent=0 // pred_fallthru
    _
  %v11 = vld [vmem:[%s0] sm:$0xf]
  %v12 = vld [vmem:[%s1] sm:$0x3]
  %v14 = vlaneseq
  %v15 = vshrl.u32 %v14, 7
  %v16 = vsub.s32 0, %v15
  %v17 = vrot.slane %v12, %v16
  %v18 = vlaneseq
  %v19 = vshrl.u32 %v18, 7
  %v20 = vsub.s32 1, %v19
  %v21 = vrot.slane %v12, %v20
  %v22 = vcombine.low %v17, %v21
  %v24 = vunpack.c.l.s4 1983009808
  %v25 = vunpack.c.0.s8 %v24
  %v26 = vlaneseq
  %v27 = vshrl.u32 %v26, 7
  %v28 = vsub.s32 %v25, %v27
  %v29 = vrot.slane %v22, %v28
  %v31 = vadd.f32 %v11, %v29
  %32 = vst [vmem:[%s2] sm:$0xf] %v31
  // Predicated region
  $region10: #{positional_encoding_forward.1} parent=0 // pred_check
    _
  $region11: #{positional_encoding_forward.1} parent=0 // pred_check_branch
    %34 = sbr.rel (0) target = $region13
  $region12: #{positional_encoding_forward.1} parent=0 // pred_region
    _
  $region13: #{positional_encoding_forward.1} parent=0 // pred_fallthru
    _
  // Predicated region
  $region14: #{positional_encoding_forward.1} parent=0 // pred_check
    _
  $region15: #{positional_encoding_forward.1} parent=0 // pred_check_branch
    %36 = sbr.rel (0) target = $region17
  $region16: #{positional_encoding_forward.1} parent=0 // pred_region
    _
  $region17: #{positional_encoding_forward.1} parent=0 // pred_fallthru
    _

</llo_original>
